<compile_context>
chip_gen: v6e
topology: v6e:2x2x1
jax: 0.10.0
libtpu: 0.0.40
codegen_flags: <defaults>
</compile_context>

<pallas_src>
import jax
import jax.numpy as jnp
from jax.experimental import pallas as pl
from jax.experimental.pallas import tpu as pltpu


# ---------------------------------------------------------------------------
# Per-generation tuning
# ---------------------------------------------------------------------------
def _generation_params():
    """(block_bytes, vmem_limit_bytes) for the attached TPU generation.

    v7x : 3.2 TB/s HBM, 64 MiB physical VMEM -> 8 MiB blocks, 48 MiB scoped
          limit (2 in + 2 out double-buffered blocks = 32 MiB).
    v6e : 1.4 TB/s HBM, 128 MiB physical VMEM -> 8 MiB blocks, 64 MiB limit.
    v5e : 0.8 TB/s HBM, 16 MiB scoped default -> 3 MiB blocks (4x = 12 MiB
          fits the default budget, step overhead already <7%).
    unknown -> conservative 2 MiB blocks, default scoped limit.
    """
    try:
        kind = jax.devices()[0].device_kind.lower()
    except Exception:
        kind = ""
    if "v7" in kind:
        return 8 * 1024 * 1024, 48 * 1024 * 1024
    if "v6" in kind:
        return 8 * 1024 * 1024, 64 * 1024 * 1024
    if "v5 lite" in kind or "v5e" in kind or "v5litepod" in kind:
        return 3 * 1024 * 1024, None
    return 2 * 1024 * 1024, None


def _sublane_multiple(dtype):
    """Rows per fully-packed vreg: 8 for 32-bit, 16 for bf16, 32 for int8/fp8."""
    itemsize = jnp.dtype(dtype).itemsize
    return 8 * max(1, 4 // max(1, itemsize))


def _pick_slab_layout(n_elems, sublane):
    """Factor a contiguous buffer of n_elems into (R, C) with C a multiple of
    128 (lane-dense, unmasked vst) and R a multiple of the dtype's sublane
    packing.  Wider C is tried first so R stays small.  Returns (R, C, sl) or
    None if no lane-dense factorization exists."""
    for sl in (sublane, 8):  # relax packing before giving up entirely
        for c in (8192, 4096, 2048, 1024, 512, 256, 128):
            if n_elems % (c * sl) == 0:
                return n_elems // c, c, sl
    return None


# ---------------------------------------------------------------------------
# Path 1: BlockSpec-pipelined VMEM copy
# ---------------------------------------------------------------------------
def _copy_kernel(x_ref, o_ref):
    # Identity copy of one lane-dense, sublane-aligned (tile_r, C) slab.
    o_ref[...] = x_ref[...]


def _pipeline_copy(x2d, sublane, block_bytes=None, vmem_limit=None):
    r, c = x2d.shape
    itemsize = jnp.dtype(x2d.dtype).itemsize
    if block_bytes is None:
        block_bytes, vmem_limit = _generation_params()

    row_bytes = c * itemsize
    total_bytes = r * row_bytes

    # Rows per block: as many sublane-aligned rows as fit the per-generation
    # block budget (2 in + 2 out double-buffered blocks must fit scoped VMEM).
    max_rows = max(sublane, (block_bytes // row_bytes) // sublane * sublane)
    tile_r = min(r, max_rows)

    # Give both v7x TensorCores work, but only when each half carries enough
    # HBM traffic to pay for the extra grid step (tiny inputs stay 1 block).
    if total_bytes >= 4 * 1024 * 1024 and tile_r >= r:
        tile_r = max(sublane, ((r + 1) // 2) // sublane * sublane)

    # Ragged grid: the last block is masked automatically, so no divisor
    # search can degenerate to 4 KiB tiles on awkward R.
    grid = (pl.cdiv(r, tile_r),)

    compiler_kwargs = dict(dimension_semantics=("parallel",))
    if vmem_limit is not None:
        compiler_kwargs["vmem_limit_bytes"] = int(vmem_limit)

    return pl.pallas_call(
        _copy_kernel,
        out_shape=jax.ShapeDtypeStruct((r, c), x2d.dtype),
        grid_spec=pltpu.PrefetchScalarGridSpec(
            num_scalar_prefetch=0,
            grid=grid,
            in_specs=[pl.BlockSpec((tile_r, c), lambda i: (i, 0))],
            out_specs=pl.BlockSpec((tile_r, c), lambda i: (i, 0)),
        ),
        compiler_params=pltpu.CompilerParams(**compiler_kwargs),
        # Pure-bandwidth custom call: zero compute, 2 * N * itemsize bytes.
        cost_estimate=pl.CostEstimate(
            flops=0, transcendentals=0, bytes_accessed=2 * total_bytes),
    )(x2d)


# ---------------------------------------------------------------------------
# Path 2: chunked HBM -> HBM DMA (no VMEM bounce, no grid-step overhead)
# ---------------------------------------------------------------------------
def _make_dma_chunks(r, row_bytes, sublane, max_chunks=8, min_chunk_bytes=1 << 20):
    """Static (row_start, n_rows) chunks; several chunks engage multiple DMA
    engines on large buffers, tiny buffers get a single DMA."""
    total = r * row_bytes
    n_chunks = int(min(max_chunks, max(1, total // min_chunk_bytes)))
    rows_per = -(-r // n_chunks)                       # ceil
    rows_per = max(sublane, -(-rows_per // sublane) * sublane)
    chunks, start = [], 0
    while start < r:
        size = min(rows_per, r - start)
        chunks.append((start, size))
        start += size
    return chunks


def _make_hbm_dma_kernel(chunks):
    def kernel(x_hbm, o_hbm, sems):
        # Start every chunked HBM->HBM DMA, then wait for all of them.
        for i, (start, size) in enumerate(chunks):
            pltpu.make_async_copy(
                x_hbm.at[start:start + size, :],
                o_hbm.at[start:start + size, :],
                sems.at[i],
            ).start()
        for i, (start, size) in enumerate(chunks):
            pltpu.make_async_copy(
                x_hbm.at[start:start + size, :],
                o_hbm.at[start:start + size, :],
                sems.at[i],
            ).wait()
    return kernel


def _dma_copy(x2d, sublane):
    r, c = x2d.shape
    itemsize = jnp.dtype(x2d.dtype).itemsize
    chunks = _make_dma_chunks(r, c * itemsize, sublane)
    return pl.pallas_call(
        _make_hbm_dma_kernel(chunks),
        out_shape=jax.ShapeDtypeStruct((r, c), x2d.dtype),
        in_specs=[pl.BlockSpec(memory_space=pl.ANY)],
        out_specs=pl.BlockSpec(memory_space=pl.ANY),
        scratch_shapes=[pltpu.SemaphoreType.DMA((len(chunks),))],
        cost_estimate=pl.CostEstimate(
            flops=0, transcendentals=0, bytes_accessed=2 * r * c * itemsize),
    )(x2d)


# ---------------------------------------------------------------------------
# Public wrapper: torch's x.view(x.size(0), -1)
# ---------------------------------------------------------------------------
def flatten(x, materialize=False, method="dma"):
    """Equivalent of torch's x.view(x.size(0), -1).

    Default: metadata-only reshape (what .view() is — zero data movement).
    materialize=True forces an HBM round trip through a Pallas copy:
      method="dma"      chunked HBM->HBM DMA (preferred; no VMEM bounce)
      method="pipeline" BlockSpec-pipelined lane-dense VMEM copy
    """
    b = x.shape[0]
    f = 1
    for d in x.shape[1:]:
        f *= d

    if not materialize:
        # The real optimization: .view() is free; don't launch a kernel.
        return x.reshape(b, f)

    n = b * f
    layout = _pick_slab_layout(n, _sublane_multiple(x.dtype))
    if layout is None:
        # n not divisible by 8*128: the op is still just a metadata reshape,
        # so take the free path rather than a padded/masked copy.
        # TODO(synk): masked materializing copy for non-(8*128)-divisible N.
        return x.reshape(b, f)

    r, c, sl = layout
    x2d = x.reshape(r, c)                      # metadata-only glue
    if method == "dma":
        out2d = _dma_copy(x2d, sl)
    else:
        out2d = _pipeline_copy(x2d, sl)
    return out2d.reshape(b, f)                 # metadata-only glue


if __name__ == "__main__":
    key = jax.random.PRNGKey(0)

    # Small NCHW feature map: B=2, C=4, H=W=16, f32.
    x = jax.random.normal(key, (2, 4, 16, 16), dtype=jnp.float32)
    ref = x.reshape(x.shape[0], -1)

    # Default (optimized) path: kernel elided, pure metadata reshape.
    y0 = flatten(x)
    jax.block_until_ready(y0)
    assert y0.shape == (2, 4 * 16 * 16), y0.shape
    assert jnp.array_equal(y0, ref), "mismatch (free path)"

    # Pipelined VMEM copy: single lane-dense (8, 256) block.
    y1 = flatten(x, materialize=True, method="pipeline")
    jax.block_until_ready(y1)
    assert y1.shape == ref.shape and y1.dtype == x.dtype
    assert jnp.array_equal(y1, ref), "mismatch (pipeline path)"

    # Chunked HBM->HBM DMA copy.
    y2 = flatten(x, materialize=True, method="dma")
    jax.block_until_ready(y2)
    assert jnp.array_equal(y2, ref), "mismatch (dma path)"

    # bf16 input exercises dtype-aware sublane packing (16-row granularity).
    xb = jax.random.normal(jax.random.PRNGKey(1), (2, 8, 16, 32), dtype=jnp.bfloat16)
    refb = xb.reshape(2, -1)
    yb1 = flatten(xb, materialize=True, method="pipeline")
    yb2 = flatten(xb, materialize=True, method="dma")
    jax.block_until_ready((yb1, yb2))
    assert jnp.array_equal(yb1, refb), "mismatch (pipeline, bf16)"
    assert jnp.array_equal(yb2, refb), "mismatch (dma, bf16)"

    # Awkward row count -> ragged grid with a masked final block:
    # n = 3072 -> (24, 128) slab; forced 16-row tiles -> grid of 2, last block
    # half out-of-bounds (masked stores), no divisor-search degeneration.
    xr = jax.random.normal(jax.random.PRNGKey(2), (2, 3, 16, 32), dtype=jnp.float32)
    nr = 2 * 3 * 16 * 32
    r, c, sl = _pick_slab_layout(nr, _sublane_multiple(xr.dtype))
    yr = _pipeline_copy(xr.reshape(r, c), sl, block_bytes=16 * c * 4, vmem_limit=None)
    jax.block_until_ready(yr)
    assert jnp.array_equal(yr.reshape(2, -1), xr.reshape(2, -1)), "mismatch (ragged grid)"

    print("KERNEL_OK")
</pallas_src>

<mosaic_0001>
module attributes {stable_mosaic.version = 11 : i64} {
  func.func @_copy_kernel(%arg0: i32, %arg1: memref<8x256xf32, #tpu.memory_space<vmem>>, %arg2: memref<8x256xf32, #tpu.memory_space<vmem>>) attributes {dimension_semantics = [#tpu.dimension_semantics<parallel>], iteration_bounds = array<i64: 1>, scalar_prefetch = 0 : i64, scratch_operands = 0 : i64, tpu.core_type = #tpu.core_type<tc>, window_params = [{transform_indices = @transform_0, window_bounds = array<i64: 8, 256>}, {transform_indices = @transform_1, window_bounds = array<i64: 8, 256>}]} {
    %c0 = arith.constant 0 : index
    %c0_0 = arith.constant 0 : index
    %0 = vector.load %arg1[%c0, %c0_0] : memref<8x256xf32, #tpu.memory_space<vmem>>, vector<8x256xf32>
    %c0_1 = arith.constant 0 : index
    %c0_2 = arith.constant 0 : index
    %1 = vector.load %arg2[%c0_1, %c0_2] : memref<8x256xf32, #tpu.memory_space<vmem>>, vector<8x256xf32>
    tpu.vector_store %arg2[%c0_1, %c0_2], %0 {strides = array<i32>} : memref<8x256xf32, #tpu.memory_space<vmem>>, vector<8x256xf32>,
    return
  }
  func.func @transform_0(%arg0: i32) -> (i32, i32) {
    %c0_i32 = arith.constant 0 : i32
    %c0_i32_0 = arith.constant 0 : i32
    return %arg0, %c0_i32 : i32, i32
  }
  func.func @transform_1(%arg0: i32) -> (i32, i32) {
    %c0_i32 = arith.constant 0 : i32
    %c0_i32_0 = arith.constant 0 : i32
    return %arg0, %c0_i32 : i32, i32
  }
}

</mosaic_0001>

<llo_original>
// kernel: tpu_custom_call.1
$region0: #{tpu_custom_call.1}
  #allocation0 [shape = 'u32[]', space=smem, size = 0x4, offset = 0x4, fixed_abs, tag = 'smem constant byte address 0x4 - core index']
  #allocation1 [shape = 'u32[144,128]{1,0:T(1,128)}', space=vmem, size = 0x12000, scoped, tag = 'internal scratch']
  %s0 = inlined_call_operand.hbm [shape: f32[8,256], index: 0, kind: input, shape index: {}]
  %s1 = inlined_call_operand.hbm [shape: f32[8,256], index: 1, kind: output, shape index: {}]
  %s2 = sld [smem:[#allocation0]]
  $region18: #{tpu_custom_call.1} parent=0
    _
  %s4 = ssub.s32 1, %s2
  %s5 = scalar_select 0, %s4, %s2
  $region1: #{tpu_custom_call.1} parent=0
    #allocation2 [shape = 'u8[8192]{0}', space=vmem, size = 0x2000, scoped, tag = 'input window, operand 0, single buffered']
    #allocation3 [shape = 's32[1]{0}', space=sflag, size = 0x4, scoped, tag = 'scoped memory for tpu_custom_call.1']
    #allocation4 [shape = 's32[1]{0}', space=sflag, size = 0x4, scoped, tag = 'scoped memory for tpu_custom_call.1']
    #allocation5 [shape = 'u8[8192]{0}', space=vmem, size = 0x2000, scoped, tag = 'output window, operand 0, single buffered']
    %6 = vsyncpa [#allocation3], 0
    %7 = vsyncpa [#allocation4], 0
    // Predicated region
    $region2: #{tpu_custom_call.1} parent=1 // pred_check
      _
    $region3: #{tpu_custom_call.1} parent=1 // pred_check_branch
      %9 = sbr.rel (0) target = $region5
    $region4: #{tpu_custom_call.1} parent=1 // pred_region
      %s11 = ssub.s32 256, 256
      %12 = vsyncadd [#allocation3], %s11
      %s14 = sshll.u32 [#allocation2], 4
      %s15 = int_to_ptr.vmem [resolvable:$true] %s14
      %17 = dma.hbm_to_vmem [thread:$0]  %s0, 256, %s15, [#allocation3]
    $region5: #{tpu_custom_call.1} parent=1 // pred_fallthru
      _
    // Predicated region
    $region6: #{tpu_custom_call.1} parent=1 // pred_check
      _
    $region7: #{tpu_custom_call.1} parent=1 // pred_check_branch
      %19 = sbr.rel (0) target = $region9
    $region8: #{tpu_custom_call.1} parent=1 // pred_region
      %20 = dma.done [#allocation3], 256
    $region9: #{tpu_custom_call.1} parent=1 // pred_fallthru
      _
    %v21 = vld [vmem:[#allocation2] sm:$0xff]
    %v22 = vld [vmem:[#allocation2 + $0x8] sm:$0xff]
    %23 = vst [vmem:[#allocation5] sm:$0xff] %v21
    %24 = vst [vmem:[#allocation5 + $0x8] sm:$0xff] %v22
    // Predicated region
    $region10: #{tpu_custom_call.1} parent=1 // pred_check
      _
    $region11: #{tpu_custom_call.1} parent=1 // pred_check_branch
      %26 = sbr.rel (0) target = $region13
    $region12: #{tpu_custom_call.1} parent=1 // pred_region
      %s28 = ssub.s32 256, 256
      %29 = vsyncadd [#allocation4], %s28
      %s31 = sshll.u32 [#allocation5], 4
      %s32 = int_to_ptr.vmem [resolvable:$true] %s31
      %34 = dma.vmem_to_hbm [thread:$0]  %s32, 256, %s1, [#allocation4]
    $region13: #{tpu_custom_call.1} parent=1 // pred_fallthru
      _
    // Predicated region
    $region14: #{tpu_custom_call.1} parent=1 // pred_check
      _
    $region15: #{tpu_custom_call.1} parent=1 // pred_check_branch
      %36 = sbr.rel (0) target = $region17
    $region16: #{tpu_custom_call.1} parent=1 // pred_region
      %37 = dma.done [#allocation4], 256
    $region17: #{tpu_custom_call.1} parent=1 // pred_fallthru
      _
    %38 = vsyncpa [#allocation3], 1
    %39 = vsyncpa [#allocation4], 1

</llo_original>
